<compile_context>
chip_gen: v6e
topology: v6e:2x2x1
jax: 0.10.0
libtpu: 0.0.40
codegen_flags: <defaults>
</compile_context>

<pallas_src>
import jax
import jax.numpy as jnp
from jax.experimental import pallas as pl
from jax.experimental.pallas import tpu as pltpu

DEFAULT_TR = 512    # sublane rows per block
DEFAULT_TC = 1024   # lanes per block (multiple of 128)


def _sigmoid(z):
    # Exact identity: sigmoid(z) = 0.5*tanh(z/2) + 0.5 -> one EUP op/element.
    return 0.5 * jnp.tanh(0.5 * z) + 0.5


def _xor_kernel(p_ref, x_ref, o_ref):
    # p_ref: SMEM f32[9] = [w1_00, w1_01, w1_10, w1_11, b1_0, b1_1,
    #                       w2_0, w2_1, b2_0]           (w1/w2 stored (in,out))
    # x_ref: VMEM (2, TR, TC)  feature-major, batch on (sublane, lane)
    # o_ref: VMEM (TR, TC)     dense output block
    x0 = x_ref[0]                       # (TR, TC), leading-axis index: free
    x1 = x_ref[1]
    h0 = _sigmoid(x0 * p_ref[0] + x1 * p_ref[2] + p_ref[4])
    h1 = _sigmoid(x0 * p_ref[1] + x1 * p_ref[3] + p_ref[5])
    o_ref[...] = _sigmoid(h0 * p_ref[6] + h1 * p_ref[7] + p_ref[8])


def pack_params(w1, b1, w2, b2):
    """Pack (2,2)/(2,)/(2,1)/(1,) params into a flat f32[9] vector (do once)."""
    return jnp.concatenate(
        [w1.reshape(-1), b1.reshape(-1), w2.reshape(-1), b2.reshape(-1)]
    ).astype(jnp.float32)


def xor_forward(x, params, *, tr=DEFAULT_TR, tc=DEFAULT_TC, min_pallas_batch=0):
    """x: (B, 2) f32; params: f32[9] from pack_params(). Returns (B, 1) f32."""
    B = x.shape[0]
    x = x.astype(jnp.float32)

    if B < min_pallas_batch:
        # Tiny-batch short circuit: kernel launch cost dwarfs ~15 flops/row.
        w1 = params[0:4].reshape(2, 2)
        b1 = params[4:6]
        w2 = params[6:8].reshape(2, 1)
        b2 = params[8:9]
        return _sigmoid(_sigmoid(x @ w1 + b1) @ w2 + b2)

    # Feature-major (2, B) view: batch goes onto (sublane, lane) axes below.
    # TODO(synk): accept feature-major input upstream to drop this one
    # transpose HBM pass for very large batches.
    xt = x.T

    if B <= tc:
        # Single block == full array dims, so the (8,128) rule does not apply.
        R, C, br = 1, B, 1
    else:
        C = tc
        R = -(-B // C)                  # rows of C lanes needed
        if R <= tr:
            br = R                      # one row-block == full row extent
        else:
            R = -(-R // tr) * tr        # round rows up to a block multiple
            br = tr

    Bp = R * C
    if Bp != B:
        # Padded tail lanes run harmless sigmoid(garbage=0) and are sliced off.
        xt = jnp.pad(xt, ((0, 0), (0, Bp - B)))
    xt3 = xt.reshape(2, R, C)

    out = pl.pallas_call(
        _xor_kernel,
        out_shape=jax.ShapeDtypeStruct((R, C), jnp.float32),
        grid=(R // br,),
        in_specs=[
            # Tiny param vector: untiled, SMEM-resident across all grid steps.
            pl.BlockSpec(memory_space=pltpu.MemorySpace.SMEM),
            pl.BlockSpec((2, br, C), lambda i: (0, i, 0)),
        ],
        out_specs=pl.BlockSpec((br, C), lambda i: (i, 0)),
        compiler_params=pltpu.CompilerParams(
            # Row-blocks are embarrassingly parallel -> shard across TCs (v7x).
            dimension_semantics=("parallel",),
        ),
    )(params, xt3)

    return out.reshape(-1)[:B].reshape(B, 1)


def init_params(key):
    """nn.Linear-style init (uniform +-1/sqrt(fan_in)); weights stored (in, out)."""
    k1, k2, k3, k4 = jax.random.split(key, 4)
    bound = 1.0 / jnp.sqrt(2.0)
    w1 = jax.random.uniform(k1, (2, 2), jnp.float32, -bound, bound)
    b1 = jax.random.uniform(k2, (2,), jnp.float32, -bound, bound)
    w2 = jax.random.uniform(k3, (2, 1), jnp.float32, -bound, bound)
    b2 = jax.random.uniform(k4, (1,), jnp.float32, -bound, bound)
    return w1, b1, w2, b2


def _reference(x, w1, b1, w2, b2):
    h = jax.nn.sigmoid(x @ w1 + b1)
    return jax.nn.sigmoid(h @ w2 + b2)


if __name__ == "__main__":
    key = jax.random.PRNGKey(0)
    w1, b1, w2, b2 = init_params(key)
    params = pack_params(w1, b1, w2, b2)   # packed once, reused for every call

    # 1) Classic XOR truth table (batch=4, features=2): single tiny block.
    x = jnp.array([[0.0, 0.0], [0.0, 1.0], [1.0, 0.0], [1.0, 1.0]],
                  dtype=jnp.float32)
    out = jax.block_until_ready(xor_forward(x, params))
    assert out.shape == (4, 1)
    assert jnp.allclose(out, _reference(x, w1, b1, w2, b2), atol=1e-5), out

    # 2) Multi-grid-step tiled path (small tiles just to exercise the grid).
    xb = jax.random.uniform(jax.random.PRNGKey(1), (4096, 2), jnp.float32)
    outb = jax.block_until_ready(xor_forward(xb, params, tr=8, tc=256))
    assert outb.shape == (4096, 1)
    assert jnp.allclose(outb, _reference(xb, w1, b1, w2, b2), atol=1e-5)

    # 3) Ragged batch (padding path) with default block sizes.
    xc = jax.random.uniform(jax.random.PRNGKey(2), (2500, 2), jnp.float32)
    outc = jax.block_until_ready(xor_forward(xc, params))
    assert outc.shape == (2500, 1)
    assert jnp.allclose(outc, _reference(xc, w1, b1, w2, b2), atol=1e-5)

    print("KERNEL_OK")
</pallas_src>

<mosaic_0001>
module attributes {stable_mosaic.version = 11 : i64} {
  func.func @_xor_kernel(%arg0: i32, %arg1: memref<9xf32, #tpu.memory_space<smem>>, %arg2: memref<2x1x4xf32, #tpu.memory_space<vmem>>, %arg3: memref<1x4xf32, #tpu.memory_space<vmem>>) attributes {dimension_semantics = [#tpu.dimension_semantics<parallel>], iteration_bounds = array<i64: 1>, scalar_prefetch = 0 : i64, scratch_operands = 0 : i64, tpu.core_type = #tpu.core_type<tc>, window_params = [{transform_indices = @transform_0, window_bounds = array<i64: 9>}, {transform_indices = @transform_1, window_bounds = array<i64: 2, 1, 4>}, {transform_indices = @transform_2, window_bounds = array<i64: 1, 4>}]} {
    %c0 = arith.constant 0 : index
    %c0_0 = arith.constant 0 : index
    %c0_1 = arith.constant 0 : index
    %0 = vector.load %arg2[%c0, %c0_0, %c0_1] : memref<2x1x4xf32, #tpu.memory_space<vmem>>, vector<1x1x4xf32>
    %1 = vector.shape_cast %0 : vector<1x1x4xf32> to vector<1x4xf32>
    %c1 = arith.constant 1 : index
    %c0_2 = arith.constant 0 : index
    %c0_3 = arith.constant 0 : index
    %2 = vector.load %arg2[%c1, %c0_2, %c0_3] : memref<2x1x4xf32, #tpu.memory_space<vmem>>, vector<1x1x4xf32>
    %3 = vector.shape_cast %2 : vector<1x1x4xf32> to vector<1x4xf32>
    %c0_4 = arith.constant 0 : index
    %4 = memref.load %arg1[%c0_4] : memref<9xf32, #tpu.memory_space<smem>>
    %5 = vector.broadcast %4 : f32 to vector<1x4xf32>
    %6 = arith.mulf %1, %5 : vector<1x4xf32>
    %c2 = arith.constant 2 : index
    %7 = memref.load %arg1[%c2] : memref<9xf32, #tpu.memory_space<smem>>
    %8 = vector.broadcast %7 : f32 to vector<1x4xf32>
    %9 = arith.mulf %3, %8 : vector<1x4xf32>
    %10 = arith.addf %6, %9 : vector<1x4xf32>
    %c4 = arith.constant 4 : index
    %11 = memref.load %arg1[%c4] : memref<9xf32, #tpu.memory_space<smem>>
    %12 = vector.broadcast %11 : f32 to vector<1x4xf32>
    %13 = arith.addf %10, %12 : vector<1x4xf32>
    %cst = arith.constant 5.000000e-01 : f32
    %14 = vector.broadcast %cst : f32 to vector<1x4xf32>
    %15 = arith.mulf %14, %13 : vector<1x4xf32>
    %16 = math.tanh %15 : vector<1x4xf32>
    %cst_5 = arith.constant 5.000000e-01 : f32
    %17 = vector.broadcast %cst_5 : f32 to vector<1x4xf32>
    %18 = arith.mulf %17, %16 : vector<1x4xf32>
    %cst_6 = arith.constant 5.000000e-01 : f32
    %19 = vector.broadcast %cst_6 : f32 to vector<1x4xf32>
    %20 = arith.addf %18, %19 : vector<1x4xf32>
    %c1_7 = arith.constant 1 : index
    %21 = memref.load %arg1[%c1_7] : memref<9xf32, #tpu.memory_space<smem>>
    %22 = vector.broadcast %21 : f32 to vector<1x4xf32>
    %23 = arith.mulf %1, %22 : vector<1x4xf32>
    %c3 = arith.constant 3 : index
    %24 = memref.load %arg1[%c3] : memref<9xf32, #tpu.memory_space<smem>>
    %25 = vector.broadcast %24 : f32 to vector<1x4xf32>
    %26 = arith.mulf %3, %25 : vector<1x4xf32>
    %27 = arith.addf %23, %26 : vector<1x4xf32>
    %c5 = arith.constant 5 : index
    %28 = memref.load %arg1[%c5] : memref<9xf32, #tpu.memory_space<smem>>
    %29 = vector.broadcast %28 : f32 to vector<1x4xf32>
    %30 = arith.addf %27, %29 : vector<1x4xf32>
    %cst_8 = arith.constant 5.000000e-01 : f32
    %31 = vector.broadcast %cst_8 : f32 to vector<1x4xf32>
    %32 = arith.mulf %31, %30 : vector<1x4xf32>
    %33 = math.tanh %32 : vector<1x4xf32>
    %cst_9 = arith.constant 5.000000e-01 : f32
    %34 = vector.broadcast %cst_9 : f32 to vector<1x4xf32>
    %35 = arith.mulf %34, %33 : vector<1x4xf32>
    %cst_10 = arith.constant 5.000000e-01 : f32
    %36 = vector.broadcast %cst_10 : f32 to vector<1x4xf32>
    %37 = arith.addf %35, %36 : vector<1x4xf32>
    %c6 = arith.constant 6 : index
    %38 = memref.load %arg1[%c6] : memref<9xf32, #tpu.memory_space<smem>>
    %39 = vector.broadcast %38 : f32 to vector<1x4xf32>
    %40 = arith.mulf %20, %39 : vector<1x4xf32>
    %c7 = arith.constant 7 : index
    %41 = memref.load %arg1[%c7] : memref<9xf32, #tpu.memory_space<smem>>
    %42 = vector.broadcast %41 : f32 to vector<1x4xf32>
    %43 = arith.mulf %37, %42 : vector<1x4xf32>
    %44 = arith.addf %40, %43 : vector<1x4xf32>
    %c8 = arith.constant 8 : index
    %45 = memref.load %arg1[%c8] : memref<9xf32, #tpu.memory_space<smem>>
    %46 = vector.broadcast %45 : f32 to vector<1x4xf32>
    %47 = arith.addf %44, %46 : vector<1x4xf32>
    %cst_11 = arith.constant 5.000000e-01 : f32
    %48 = vector.broadcast %cst_11 : f32 to vector<1x4xf32>
    %49 = arith.mulf %48, %47 : vector<1x4xf32>
    %50 = math.tanh %49 : vector<1x4xf32>
    %cst_12 = arith.constant 5.000000e-01 : f32
    %51 = vector.broadcast %cst_12 : f32 to vector<1x4xf32>
    %52 = arith.mulf %51, %50 : vector<1x4xf32>
    %cst_13 = arith.constant 5.000000e-01 : f32
    %53 = vector.broadcast %cst_13 : f32 to vector<1x4xf32>
    %54 = arith.addf %52, %53 : vector<1x4xf32>
    %c0_14 = arith.constant 0 : index
    %c0_15 = arith.constant 0 : index
    %55 = vector.load %arg3[%c0_14, %c0_15] : memref<1x4xf32, #tpu.memory_space<vmem>>, vector<1x4xf32>
    tpu.vector_store %arg3[%c0_14, %c0_15], %54 {strides = array<i32>} : memref<1x4xf32, #tpu.memory_space<vmem>>, vector<1x4xf32>,
    return
  }
  func.func @transform_0(%arg0: i32) -> i32 {
    %c0_i32 = arith.constant 0 : i32
    %c0_i32_0 = arith.constant 0 : i32
    return %c0_i32 : i32
  }
  func.func @transform_1(%arg0: i32) -> (i32, i32, i32) {
    %c0_i32 = arith.constant 0 : i32
    %c0_i32_0 = arith.constant 0 : i32
    %c0_i32_1 = arith.constant 0 : i32
    return %c0_i32, %arg0, %c0_i32_0 : i32, i32, i32
  }
  func.func @transform_2(%arg0: i32) -> (i32, i32) {
    %c0_i32 = arith.constant 0 : i32
    %c0_i32_0 = arith.constant 0 : i32
    return %arg0, %c0_i32 : i32, i32
  }
}

</mosaic_0001>

<llo_original>
// kernel: tpu_custom_call.1
$region0: #{tpu_custom_call.1}
  #allocation0 [shape = 'u32[]', space=smem, size = 0x4, offset = 0x4, fixed_abs, tag = 'smem constant byte address 0x4 - core index']
  #allocation1 [shape = 'u32[144,128]{1,0:T(1,128)}', space=vmem, size = 0x12000, scoped, tag = 'internal scratch']
  %s0 = inlined_call_operand.hbm [shape: f32[9], index: 0, kind: input, shape index: {}]
  %s1 = inlined_call_operand.hbm [shape: f32[2,1,4], index: 1, kind: input, shape index: {}]
  %s2 = inlined_call_operand.hbm [shape: f32[1,4], index: 2, kind: output, shape index: {}]
  %s3 = sld [smem:[#allocation0]]
  $region26: #{tpu_custom_call.1} parent=0
    _
  %s5 = ssub.s32 1, %s3
  %s6 = scalar_select 0, %s5, %s3
  $region1: #{tpu_custom_call.1} parent=0
    #allocation2 [shape = 'u8[512]{0}', space=smem, size = 0x200, scoped, tag = 'input window, operand 0, single buffered']
    #allocation3 [shape = 's32[1]{0}', space=sflag, size = 0x4, scoped, tag = 'scoped memory for tpu_custom_call.1']
    #allocation4 [shape = 's32[1]{0}', space=sflag, size = 0x4, scoped, tag = 'scoped memory for tpu_custom_call.1']
    #allocation5 [shape = 's32[1]{0}', space=sflag, size = 0x4, scoped, tag = 'scoped memory for tpu_custom_call.1']
    #allocation6 [shape = 'u8[1024]{0}', space=vmem, size = 0x400, scoped, tag = 'input window, operand 1, single buffered']
    #allocation7 [shape = 'u8[512]{0}', space=vmem, size = 0x400, scoped, tag = 'output window, operand 0, single buffered']
    %7 = vsyncpa [#allocation5], 0
    %8 = vsyncpa [#allocation3], 0
    %9 = vsyncpa [#allocation4], 0
    // Predicated region
    $region2: #{tpu_custom_call.1} parent=1 // pred_check
      _
    $region3: #{tpu_custom_call.1} parent=1 // pred_check_branch
      %11 = sbr.rel (0) target = $region5
    $region4: #{tpu_custom_call.1} parent=1 // pred_region
      %s13 = ssub.s32 16, 16
      %14 = vsyncadd [#allocation5], %s13
      %17 = dma.hbm_to_smem %s0, 16, [#allocation2], [#allocation5]
    $region5: #{tpu_custom_call.1} parent=1 // pred_fallthru
      _
    // Predicated region
    $region6: #{tpu_custom_call.1} parent=1 // pred_check
      _
    $region7: #{tpu_custom_call.1} parent=1 // pred_check_branch
      %19 = sbr.rel (0) target = $region9
    $region8: #{tpu_custom_call.1} parent=1 // pred_region
      %s21 = ssub.s32 32, 32
      %22 = vsyncadd [#allocation3], %s21
      %s23 = sshll.u32 [#allocation6], 4
      %s24 = int_to_ptr.vmem [resolvable:$true] %s23
      %29 = dma.hbm_to_vmem [thread:$0]  %s1, 32, %s24, [#allocation3], 16, 16, 1
    $region9: #{tpu_custom_call.1} parent=1 // pred_fallthru
      _
    // Predicated region
    $region10: #{tpu_custom_call.1} parent=1 // pred_check
      _
    $region11: #{tpu_custom_call.1} parent=1 // pred_check_branch
      %31 = sbr.rel (0) target = $region13
    $region12: #{tpu_custom_call.1} parent=1 // pred_region
      %32 = dma.done [#allocation5], 16
    $region13: #{tpu_custom_call.1} parent=1 // pred_fallthru
      _
    // Predicated region
    $region14: #{tpu_custom_call.1} parent=1 // pred_check
      _
    $region15: #{tpu_custom_call.1} parent=1 // pred_check_branch
      %34 = sbr.rel (0) target = $region17
    $region16: #{tpu_custom_call.1} parent=1 // pred_region
      %35 = dma.done [#allocation3], 32
    $region17: #{tpu_custom_call.1} parent=1 // pred_fallthru
      _
    %36 = sfence
    %v37 = vld [vmem:[#allocation6] sm:$0x1]
    %s38 = scalar_lea.vmem [#allocation6], 1
    %v39 = vld [vmem:[%s38] sm:$0x1]
    %s40 = sld [smem:[#allocation2]]
    %v41 = vstv %s40
    %v42 = vmul.f32 %v37, %v41
    %s43 = sld [smem:[#allocation2 + $0x2]]
    %v44 = vstv %s43
    %v45 = vmul.f32 %v39, %v44
    %v46 = vadd.f32 %v42, %v45
    %s47 = sld [smem:[#allocation2 + $0x4]]
    %v48 = vstv %s47
    %v49 = vadd.f32 %v46, %v48
    %v50 = vmul.f32 %v49, 0.5
    %v51 = vtanh.pop %v50
    %v52 = vmul.f32 %v51, 0.5
    %v53 = vadd.f32 %v52, 0.5
    %s54 = sld [smem:[#allocation2 + $0x1]]
    %v55 = vstv %s54
    %v56 = vmul.f32 %v37, %v55
    %s57 = sld [smem:[#allocation2 + $0x3]]
    %v58 = vstv %s57
    %v59 = vmul.f32 %v39, %v58
    %v60 = vadd.f32 %v56, %v59
    %s61 = sld [smem:[#allocation2 + $0x5]]
    %v62 = vstv %s61
    %v63 = vadd.f32 %v60, %v62
    %v64 = vmul.f32 %v63, 0.5
    %v65 = vtanh.pop %v64
    %v66 = vmul.f32 %v65, 0.5
    %v67 = vadd.f32 %v66, 0.5
    %s68 = sld [smem:[#allocation2 + $0x6]]
    %v69 = vstv %s68
    %v70 = vmul.f32 %v53, %v69
    %s71 = sld [smem:[#allocation2 + $0x7]]
    %v72 = vstv %s71
    %v73 = vmul.f32 %v67, %v72
    %v74 = vadd.f32 %v70, %v73
    %s75 = sld [smem:[#allocation2 + $0x8]]
    %v76 = vstv %s75
    %v77 = vadd.f32 %v74, %v76
    %v78 = vmul.f32 %v77, 0.5
    %v79 = vtanh.pop %v78
    %v80 = vmul.f32 %v79, 0.5
    %v81 = vadd.f32 %v80, 0.5
    %vm82 = vcmask 24576
    %83 = vst.msk [vmem:[#allocation7] sm:$0x1] %vm82, %v81
    // Predicated region
    $region18: #{tpu_custom_call.1} parent=1 // pred_check
      _
    $region19: #{tpu_custom_call.1} parent=1 // pred_check_branch
      %85 = sbr.rel (0) target = $region21
    $region20: #{tpu_custom_call.1} parent=1 // pred_region
      %s87 = ssub.s32 16, 16
      %88 = vsyncadd [#allocation4], %s87
      %s90 = sshll.u32 [#allocation7], 4
      %s91 = int_to_ptr.vmem [resolvable:$true] %s90
      %93 = dma.vmem_to_hbm [thread:$0]  %s91, 16, %s2, [#allocation4]
    $region21: #{tpu_custom_call.1} parent=1 // pred_fallthru
      _
    // Predicated region
    $region22: #{tpu_custom_call.1} parent=1 // pred_check
      _
    $region23: #{tpu_custom_call.1} parent=1 // pred_check_branch
      %95 = sbr.rel (0) target = $region25
    $region24: #{tpu_custom_call.1} parent=1 // pred_region
      %96 = dma.done [#allocation4], 16
    $region25: #{tpu_custom_call.1} parent=1 // pred_fallthru
      _
    %97 = vsyncpa [#allocation3], 1
    %98 = vsyncpa [#allocation4], 1
    %99 = vsyncpa [#allocation5], 1

</llo_original>
